<compile_context>
chip_gen: v6e
topology: v6e:2x2x1
jax: 0.10.0
libtpu: 0.0.40
codegen_flags: <defaults>
</compile_context>

<pallas_src>
import functools

import jax
import jax.numpy as jnp
from jax import lax
from jax.experimental import pallas as pl
from jax.experimental.pallas import tpu as pltpu

_CHUNK = 512  # lane-chunk processed register-resident inside the kernel (multiple of 128)


def _mlp_kernel(x_ref, w1_ref, b1_ref, w2_ref, b2_ref, w3_ref, b3_ref, o_ref,
                *, use_bf16_matmul: bool = False):
    # x_ref : (1, TN)   batch tile on lanes
    # w1_ref: (H, 1)    b1_ref: (H, 1)
    # w2_ref: (H, H)    b2_ref: (H, 1)
    # w3_ref: (1, H)    b3_ref: (1, 1)
    # o_ref : (1, TN)
    w1 = w1_ref[...]
    b1 = b1_ref[...]
    w2 = w2_ref[...]
    b2 = b2_ref[...]
    w3 = w3_ref[...]
    b3 = b3_ref[...]

    if use_bf16_matmul:
        # Optional narrow-precision MXU path for v6e/v7x (~1e-3 rel error).
        w2_mm = w2.astype(jnp.bfloat16)
        w3_mm = w3.astype(jnp.bfloat16)
    else:
        w2_mm = w2
        w3_mm = w3

    tn = x_ref.shape[1]
    chunk = min(_CHUNK, tn)
    n_chunks = tn // chunk  # wrapper guarantees tn is a multiple of _CHUNK

    def body(c, carry):
        start = pl.multiple_of(c * chunk, chunk)
        x = x_ref[:, pl.ds(start, chunk)]                       # (1, chunk)

        # Layer 1: Linear(1, H) -> outer product = pure VPU broadcast (no MXU).
        h1 = jnp.tanh(w1 * x + b1)                              # (H, chunk)

        # Layer 2: Linear(H, H) -> MXU matmul, lane-dense output.
        h1_mm = h1.astype(w2_mm.dtype)
        h2 = jnp.tanh(
            jnp.dot(w2_mm, h1_mm, preferred_element_type=jnp.float32) + b2
        )                                                       # (H, chunk)

        # Layer 3: Linear(H, 1) -> also on the (idle) MXU instead of VPU+XLU reduce.
        h2_mm = h2.astype(w3_mm.dtype)
        y = jnp.dot(w3_mm, h2_mm, preferred_element_type=jnp.float32) + b3  # (1, chunk)

        o_ref[:, pl.ds(start, chunk)] = y.astype(o_ref.dtype)
        return carry

    # Short fixed trip-counts: unroll for LLO scheduler visibility.
    lax.fori_loop(0, n_chunks, body, 0, unroll=bool(n_chunks <= 8))


def mlp_interpolator(x, params, *, tn=8192, use_bf16_matmul=False):
    """x: (N, 1) float32.  params: PyTorch-layout weights/biases.

    Returns (N, 1) float32, identical to the PyTorch module's forward.
    """
    N = x.shape[0]
    H = params["w1"].shape[0]

    # Batch goes on the lane axis; tile must be a multiple of the inner chunk
    # (which is itself a multiple of 128 -> satisfies the lane constraint).
    tn = max(int(tn), _CHUNK)
    tn = pl.cdiv(tn, _CHUNK) * _CHUNK
    grid_n = pl.cdiv(N, tn)
    n_pad = grid_n * tn

    # Cheap padding: (N,1) is contiguous, so reshape is free; pad only the tail.
    x_row = x.astype(jnp.float32).reshape(1, N)
    if n_pad != N:
        x_row = jnp.pad(x_row, ((0, 0), (0, n_pad - N)))

    # Column-layout parameters (biases as (out, 1) so they broadcast over lanes).
    w1 = params["w1"].reshape(H, 1).astype(jnp.float32)   # (H, 1)
    b1 = params["b1"].reshape(H, 1).astype(jnp.float32)   # (H, 1)
    w2 = params["w2"].astype(jnp.float32)                 # (H, H)
    b2 = params["b2"].reshape(H, 1).astype(jnp.float32)   # (H, 1)
    w3 = params["w3"].reshape(1, H).astype(jnp.float32)   # (1, H)  (PyTorch layout already)
    b3 = params["b3"].reshape(1, 1).astype(jnp.float32)   # (1, 1)

    const = lambda shape: pl.BlockSpec(shape, lambda i: (0, 0))

    # Explicit VMEM budget: double-buffered x/out tiles + weights + chunk temporaries.
    vmem_need = (
        2 * 2 * tn * 4                       # x and out tiles, double-buffered
        + 2 * (H * H + 4 * H + 2) * 4        # weights/biases (worst-case double-buffered)
        + 4 * 2 * H * _CHUNK * 4             # h1/h2 chunk temporaries, generous slack
        + (2 << 20)                          # Mosaic internal scratch headroom
    )
    # Floor at 16 MiB (v5e scoped default), cap at 48 MiB (under v7x's 64 MiB physical).
    vmem_limit = int(min(max(vmem_need, 16 * 1024 * 1024), 48 * 1024 * 1024))

    cost = pl.CostEstimate(
        flops=2 * H * (H + 2) * n_pad,          # layer2 dominates; layers 1 & 3 ~2*H*N each
        transcendentals=2 * H * n_pad,          # two tanh layers of width H
        bytes_accessed=8 * n_pad + 4 * (H * H + 4 * H + 2),
    )

    kernel = functools.partial(_mlp_kernel, use_bf16_matmul=use_bf16_matmul)

    out_row = pl.pallas_call(
        kernel,
        out_shape=jax.ShapeDtypeStruct((1, n_pad), jnp.float32),
        grid_spec=pltpu.PrefetchScalarGridSpec(
            num_scalar_prefetch=0,
            grid=(grid_n,),
            in_specs=[
                pl.BlockSpec((1, tn), lambda i: (0, i)),  # x tile (lane-dense)
                const((H, 1)),   # w1
                const((H, 1)),   # b1
                const((H, H)),   # w2
                const((H, 1)),   # b2
                const((1, H)),   # w3 (row vector -> layer-3 MXU matmul)
                const((1, 1)),   # b3
            ],
            out_specs=pl.BlockSpec((1, tn), lambda i: (0, i)),  # lane-dense store
        ),
        compiler_params=pltpu.CompilerParams(
            # Batch axis is embarrassingly parallel -> shards across TCs on v7x.
            dimension_semantics=("parallel",),
            vmem_limit_bytes=vmem_limit,
        ),
        cost_estimate=cost,
    )(x_row, w1, b1, w2, b2, w3, b3)

    return out_row[0, :N].reshape(N, 1)


def init_params(key, hidden_size=64):
    """Deterministic synthetic init matching the PyTorch module's layout.
    PyTorch Linear stores weight as (out_features, in_features), bias as (out,)."""
    k1, k2, k3, k4, k5, k6 = jax.random.split(key, 6)

    def uniform(k, shape, fan_in):
        bound = 1.0 / jnp.sqrt(float(fan_in))
        return jax.random.uniform(k, shape, jnp.float32, -bound, bound)

    H = hidden_size
    return {
        "w1": uniform(k1, (H, 1), 1),   # Linear(1, H).weight
        "b1": uniform(k2, (H,), 1),     # Linear(1, H).bias
        "w2": uniform(k3, (H, H), H),   # Linear(H, H).weight
        "b2": uniform(k4, (H,), H),
        "w3": uniform(k5, (1, H), H),   # Linear(H, 1).weight
        "b3": uniform(k6, (1,), H),
    }


def mlp_reference(x, p):
    """Pure-JAX reference identical to the PyTorch forward (row layout)."""
    h1 = jnp.tanh(x @ p["w1"].T + p["b1"])
    h2 = jnp.tanh(h1 @ p["w2"].T + p["b2"])
    return h2 @ p["w3"].T + p["b3"]


if __name__ == "__main__":
    key = jax.random.PRNGKey(0)
    kx, kp = jax.random.split(key)

    # Small test shapes (N deliberately not a multiple of 128 to exercise padding).
    N, H = 500, 64
    x = jax.random.normal(kx, (N, 1), jnp.float32)
    params = init_params(kp, hidden_size=H)

    # tn=512 keeps the demo tiny; production use keeps the default tn=8192.
    out = mlp_interpolator(x, params, tn=512)
    out = jax.block_until_ready(out)

    ref = mlp_reference(x, params)
    assert out.shape == (N, 1)
    assert jnp.allclose(out, ref, atol=1e-5, rtol=1e-5), float(jnp.max(jnp.abs(out - ref)))

    print("KERNEL_OK")
</pallas_src>

<mosaic_0001>
module attributes {stable_mosaic.version = 11 : i64} {
  func.func @_mlp_kernel(%arg0: i32, %arg1: memref<1x512xf32, #tpu.memory_space<vmem>>, %arg2: memref<64x1xf32, #tpu.memory_space<vmem>>, %arg3: memref<64x1xf32, #tpu.memory_space<vmem>>, %arg4: memref<64x64xf32, #tpu.memory_space<vmem>>, %arg5: memref<64x1xf32, #tpu.memory_space<vmem>>, %arg6: memref<1x64xf32, #tpu.memory_space<vmem>>, %arg7: memref<1x1xf32, #tpu.memory_space<vmem>>, %arg8: memref<1x512xf32, #tpu.memory_space<vmem>>) attributes {dimension_semantics = [#tpu.dimension_semantics<parallel>], iteration_bounds = array<i64: 1>, scalar_prefetch = 0 : i64, scratch_operands = 0 : i64, tpu.core_type = #tpu.core_type<tc>, window_params = [{transform_indices = @transform_0, window_bounds = array<i64: 1, 512>}, {pipeline_mode = #tpu.pipeline_mode<synchronous>, transform_indices = @transform_1, window_bounds = array<i64: 64, 1>}, {pipeline_mode = #tpu.pipeline_mode<synchronous>, transform_indices = @transform_2, window_bounds = array<i64: 64, 1>}, {pipeline_mode = #tpu.pipeline_mode<synchronous>, transform_indices = @transform_3, window_bounds = array<i64: 64, 64>}, {pipeline_mode = #tpu.pipeline_mode<synchronous>, transform_indices = @transform_4, window_bounds = array<i64: 64, 1>}, {pipeline_mode = #tpu.pipeline_mode<synchronous>, transform_indices = @transform_5, window_bounds = array<i64: 1, 64>}, {pipeline_mode = #tpu.pipeline_mode<synchronous>, transform_indices = @transform_6, window_bounds = array<i64: 1, 1>}, {transform_indices = @transform_7, window_bounds = array<i64: 1, 512>}]} {
    %c0 = arith.constant 0 : index
    %c0_0 = arith.constant 0 : index
    %0 = vector.load %arg2[%c0, %c0_0] : memref<64x1xf32, #tpu.memory_space<vmem>>, vector<64x1xf32>
    %c0_1 = arith.constant 0 : index
    %c0_2 = arith.constant 0 : index
    %1 = vector.load %arg3[%c0_1, %c0_2] : memref<64x1xf32, #tpu.memory_space<vmem>>, vector<64x1xf32>
    %c0_3 = arith.constant 0 : index
    %c0_4 = arith.constant 0 : index
    %2 = vector.load %arg4[%c0_3, %c0_4] : memref<64x64xf32, #tpu.memory_space<vmem>>, vector<64x64xf32>
    %c0_5 = arith.constant 0 : index
    %c0_6 = arith.constant 0 : index
    %3 = vector.load %arg5[%c0_5, %c0_6] : memref<64x1xf32, #tpu.memory_space<vmem>>, vector<64x1xf32>
    %c0_7 = arith.constant 0 : index
    %c0_8 = arith.constant 0 : index
    %4 = vector.load %arg6[%c0_7, %c0_8] : memref<1x64xf32, #tpu.memory_space<vmem>>, vector<1x64xf32>
    %c0_9 = arith.constant 0 : index
    %c0_10 = arith.constant 0 : index
    %5 = vector.load %arg7[%c0_9, %c0_10] : memref<1x1xf32, #tpu.memory_space<vmem>>, vector<1x1xf32>
    %c0_i32 = arith.constant 0 : i32
    %c512_i32 = arith.constant 512 : i32
    %6 = arith.muli %c0_i32, %c512_i32 : i32
    %7 = tpu.assume_multiple %6, 512 : i32
    %c0_11 = arith.constant 0 : index
    %8 = arith.index_cast %7 : i32 to index
    %9 = vector.load %arg1[%c0_11, %8] : memref<1x512xf32, #tpu.memory_space<vmem>>, vector<1x512xf32>
    %10 = vector.broadcast %0 : vector<64x1xf32> to vector<64x512xf32>
    %11 = vector.broadcast %9 : vector<1x512xf32> to vector<64x512xf32>
    %12 = arith.mulf %10, %11 : vector<64x512xf32>
    %13 = vector.broadcast %1 : vector<64x1xf32> to vector<64x512xf32>
    %14 = arith.addf %12, %13 : vector<64x512xf32>
    %15 = math.tanh %14 : vector<64x512xf32>
    %cst = arith.constant dense<0.000000e+00> : vector<64x512xf32>
    %16 = tpu.matmul %2, %15, %cst {dimension_numbers = #tpu.dot_dimension_numbers<[1], [0], [0], [1], [0, 0, 1, 1], [], []>} : vector<64x64xf32>, vector<64x512xf32>, vector<64x512xf32> -> vector<64x512xf32>
    %17 = vector.broadcast %3 : vector<64x1xf32> to vector<64x512xf32>
    %18 = arith.addf %16, %17 : vector<64x512xf32>
    %19 = math.tanh %18 : vector<64x512xf32>
    %cst_12 = arith.constant dense<0.000000e+00> : vector<1x512xf32>
    %20 = tpu.matmul %4, %19, %cst_12 {dimension_numbers = #tpu.dot_dimension_numbers<[1], [0], [0], [1], [0, 0, 1, 1], [], []>} : vector<1x64xf32>, vector<64x512xf32>, vector<1x512xf32> -> vector<1x512xf32>
    %21 = vector.broadcast %5 : vector<1x1xf32> to vector<1x512xf32>
    %22 = arith.addf %20, %21 : vector<1x512xf32>
    %c0_13 = arith.constant 0 : index
    %23 = arith.index_cast %7 : i32 to index
    %24 = vector.load %arg8[%c0_13, %23] : memref<1x512xf32, #tpu.memory_space<vmem>>, vector<1x512xf32>
    tpu.vector_store %arg8[%c0_13, %23], %22 {strides = array<i32>} : memref<1x512xf32, #tpu.memory_space<vmem>>, vector<1x512xf32>,
    %c1_i32 = arith.constant 1 : i32
    return
  }
  func.func @transform_0(%arg0: i32) -> (i32, i32) {
    %c0_i32 = arith.constant 0 : i32
    %c0_i32_0 = arith.constant 0 : i32
    return %c0_i32, %arg0 : i32, i32
  }
  func.func @transform_1(%arg0: i32) -> (i32, i32) {
    %c0_i32 = arith.constant 0 : i32
    %c0_i32_0 = arith.constant 0 : i32
    %c0_i32_1 = arith.constant 0 : i32
    return %c0_i32, %c0_i32_0 : i32, i32
  }
  func.func @transform_2(%arg0: i32) -> (i32, i32) {
    %c0_i32 = arith.constant 0 : i32
    %c0_i32_0 = arith.constant 0 : i32
    %c0_i32_1 = arith.constant 0 : i32
    return %c0_i32, %c0_i32_0 : i32, i32
  }
  func.func @transform_3(%arg0: i32) -> (i32, i32) {
    %c0_i32 = arith.constant 0 : i32
    %c0_i32_0 = arith.constant 0 : i32
    %c0_i32_1 = arith.constant 0 : i32
    return %c0_i32, %c0_i32_0 : i32, i32
  }
  func.func @transform_4(%arg0: i32) -> (i32, i32) {
    %c0_i32 = arith.constant 0 : i32
    %c0_i32_0 = arith.constant 0 : i32
    %c0_i32_1 = arith.constant 0 : i32
    return %c0_i32, %c0_i32_0 : i32, i32
  }
  func.func @transform_5(%arg0: i32) -> (i32, i32) {
    %c0_i32 = arith.constant 0 : i32
    %c0_i32_0 = arith.constant 0 : i32
    %c0_i32_1 = arith.constant 0 : i32
    return %c0_i32, %c0_i32_0 : i32, i32
  }
  func.func @transform_6(%arg0: i32) -> (i32, i32) {
    %c0_i32 = arith.constant 0 : i32
    %c0_i32_0 = arith.constant 0 : i32
    %c0_i32_1 = arith.constant 0 : i32
    return %c0_i32, %c0_i32_0 : i32, i32
  }
  func.func @transform_7(%arg0: i32) -> (i32, i32) {
    %c0_i32 = arith.constant 0 : i32
    %c0_i32_0 = arith.constant 0 : i32
    return %c0_i32, %arg0 : i32, i32
  }
}

</mosaic_0001>

<llo_original>
// kernel: tpu_custom_call.1
$region0: #{tpu_custom_call.1}
  #allocation0 [shape = 'u32[]', space=smem, size = 0x4, offset = 0x4, fixed_abs, tag = 'smem constant byte address 0x4 - core index']
  #allocation1 [shape = 'u32[144,128]{1,0:T(1,128)}', space=vmem, size = 0x12000, scoped, tag = 'internal scratch']
  #allocation2 [shape = 'f32[1,1]{1,0:T(1,128)S(1)}', space=vmem, size = 0x200, scoped, tag = 'scoped memory for tpu_custom_call.1']
  %s0 = inlined_call_operand.vmem [shape: f32[1,512], index: 0, kind: input, shape index: {}]
  %s1 = inlined_call_operand.vmem [shape: f32[64,1], index: 1, kind: input, shape index: {}]
  %s2 = inlined_call_operand.vmem [shape: f32[64,1], index: 2, kind: input, shape index: {}]
  %s3 = inlined_call_operand.vmem [shape: f32[64,64], index: 3, kind: input, shape index: {}]
  %s4 = inlined_call_operand.vmem [shape: f32[64,1], index: 4, kind: input, shape index: {}]
  %s5 = inlined_call_operand.vmem [shape: f32[1,64], index: 5, kind: input, shape index: {}]
  %s6 = inlined_call_operand.<no memory space> [shape: f32[1,1], index: 6, kind: input, shape index: {}]
  %s7 = inlined_call_operand.hbm [shape: f32[1,512], index: 7, kind: output, shape index: {}]
  %s8 = sld [smem:[#allocation0]]
  $region38: #{tpu_custom_call.1} parent=0
    _
  %s10 = ssub.s32 1, %s8
  %s11 = scalar_select 0, %s10, %s8
  %v12 = vstv %s6
  %13 = vst [vmem:[#allocation2] sm:$0x1] %v12
  $region1: #{tpu_custom_call.1} parent=0
    #allocation3 [shape = 'u8[2048]{0}', space=vmem, size = 0x800, scoped, tag = 'output window, operand 0, single buffered']
    #allocation4 [shape = 's32[1]{0}', space=sflag, size = 0x4, scoped, tag = 'scoped memory for tpu_custom_call.1']
    %14 = vsyncpa [#allocation4], 0
    // Predicated region
    $region2: #{tpu_custom_call.1} parent=1 // pred_check
      _
    $region3: #{tpu_custom_call.1} parent=1 // pred_check_branch
      %16 = sbr.rel (0) target = $region5
    $region4: #{tpu_custom_call.1} parent=1 // pred_region
      _
    $region5: #{tpu_custom_call.1} parent=1 // pred_fallthru
      _
    // Predicated region
    $region6: #{tpu_custom_call.1} parent=1 // pred_check
      _
    $region7: #{tpu_custom_call.1} parent=1 // pred_check_branch
      %18 = sbr.rel (0) target = $region9
    $region8: #{tpu_custom_call.1} parent=1 // pred_region
      _
    $region9: #{tpu_custom_call.1} parent=1 // pred_fallthru
      _
    // Predicated region
    $region10: #{tpu_custom_call.1} parent=1 // pred_check
      _
    $region11: #{tpu_custom_call.1} parent=1 // pred_check_branch
      %20 = sbr.rel (0) target = $region13
    $region12: #{tpu_custom_call.1} parent=1 // pred_region
      _
    $region13: #{tpu_custom_call.1} parent=1 // pred_fallthru
      _
    // Predicated region
    $region14: #{tpu_custom_call.1} parent=1 // pred_check
      _
    $region15: #{tpu_custom_call.1} parent=1 // pred_check_branch
      %22 = sbr.rel (0) target = $region17
    $region16: #{tpu_custom_call.1} parent=1 // pred_region
      _
    $region17: #{tpu_custom_call.1} parent=1 // pred_fallthru
      _
    // Predicated region
    $region18: #{tpu_custom_call.1} parent=1 // pred_check
      _
    $region19: #{tpu_custom_call.1} parent=1 // pred_check_branch
      %24 = sbr.rel (0) target = $region21
    $region20: #{tpu_custom_call.1} parent=1 // pred_region
      _
    $region21: #{tpu_custom_call.1} parent=1 // pred_fallthru
      _
    // Predicated region
    $region22: #{tpu_custom_call.1} parent=1 // pred_check
      _
    $region23: #{tpu_custom_call.1} parent=1 // pred_check_branch
      %26 = sbr.rel (0) target = $region25
    $region24: #{tpu_custom_call.1} parent=1 // pred_region
      _
    $region25: #{tpu_custom_call.1} parent=1 // pred_fallthru
      _
    // Predicated region
    $region26: #{tpu_custom_call.1} parent=1 // pred_check
      _
    $region27: #{tpu_custom_call.1} parent=1 // pred_check_branch
      %28 = sbr.rel (0) target = $region29
    $region28: #{tpu_custom_call.1} parent=1 // pred_region
      _
    $region29: #{tpu_custom_call.1} parent=1 // pred_fallthru
      _
    %v29 = vld [vmem:[%s1] sm:$0xff]
    %v30 = vld [vmem:[%s1 + $0x8] sm:$0xff]
    %v31 = vld [vmem:[%s1 + $0x10] sm:$0xff]
    %v32 = vld [vmem:[%s1 + $0x18] sm:$0xff]
    %v33 = vld [vmem:[%s1 + $0x20] sm:$0xff]
    %v34 = vld [vmem:[%s1 + $0x28] sm:$0xff]
    %v35 = vld [vmem:[%s1 + $0x30] sm:$0xff]
    %v36 = vld [vmem:[%s1 + $0x38] sm:$0xff]
    %v37 = vld [vmem:[%s2] sm:$0xff]
    %v38 = vld [vmem:[%s2 + $0x8] sm:$0xff]
    %v39 = vld [vmem:[%s2 + $0x10] sm:$0xff]
    %v40 = vld [vmem:[%s2 + $0x18] sm:$0xff]
    %v41 = vld [vmem:[%s2 + $0x20] sm:$0xff]
    %v42 = vld [vmem:[%s2 + $0x28] sm:$0xff]
    %v43 = vld [vmem:[%s2 + $0x30] sm:$0xff]
    %v44 = vld [vmem:[%s2 + $0x38] sm:$0xff]
    %v45 = vld [vmem:[%s3] sm:$0xff]
    %v46 = vld [vmem:[%s3 + $0x8] sm:$0xff]
    %v47 = vld [vmem:[%s3 + $0x10] sm:$0xff]
    %v48 = vld [vmem:[%s3 + $0x18] sm:$0xff]
    %v49 = vld [vmem:[%s3 + $0x20] sm:$0xff]
    %v50 = vld [vmem:[%s3 + $0x28] sm:$0xff]
    %v51 = vld [vmem:[%s3 + $0x30] sm:$0xff]
    %v52 = vld [vmem:[%s3 + $0x38] sm:$0xff]
    %v53 = vld [vmem:[%s4] sm:$0xff]
    %v54 = vld [vmem:[%s4 + $0x8] sm:$0xff]
    %v55 = vld [vmem:[%s4 + $0x10] sm:$0xff]
    %v56 = vld [vmem:[%s4 + $0x18] sm:$0xff]
    %v57 = vld [vmem:[%s4 + $0x20] sm:$0xff]
    %v58 = vld [vmem:[%s4 + $0x28] sm:$0xff]
    %v59 = vld [vmem:[%s4 + $0x30] sm:$0xff]
    %v60 = vld [vmem:[%s4 + $0x38] sm:$0xff]
    %v61 = vld [vmem:[%s5] sm:$0x1]
    %v62 = vld [vmem:[#allocation2] sm:$0x1]
    %v63 = vld [vmem:[%s0] sm:$0xf]
    %65 = vset.pattern.permute.xlu0 0
    %66 = vperm.xlu0 %65, %v29
    %v67 = vpop.permute.xlu0 %66
    %70 = vset.pattern.permute.xlu0 0
    %71 = vperm.xlu0 %70, %v30
    %v72 = vpop.permute.xlu0 %71
    %75 = vset.pattern.permute.xlu0 0
    %76 = vperm.xlu0 %75, %v31
    %v77 = vpop.permute.xlu0 %76
    %80 = vset.pattern.permute.xlu0 0
    %81 = vperm.xlu0 %80, %v32
    %v82 = vpop.permute.xlu0 %81
    %85 = vset.pattern.permute.xlu0 0
    %86 = vperm.xlu0 %85, %v33
    %v87 = vpop.permute.xlu0 %86
    %90 = vset.pattern.permute.xlu0 0
    %91 = vperm.xlu0 %90, %v34
    %v92 = vpop.permute.xlu0 %91
    %95 = vset.pattern.permute.xlu0 0
    %96 = vperm.xlu0 %95, %v35
    %v97 = vpop.permute.xlu0 %96
    %100 = vset.pattern.permute.xlu0 0
    %101 = vperm.xlu0 %100, %v36
    %v102 = vpop.permute.xlu0 %101
    %v105 = vlaneseq
    %v106 = vshrl.u32 %v105, 7
    %v107 = vsub.s32 0, %v106
    %v108 = vrot.slane %v63, %v107
    %v109 = vlaneseq
    %v110 = vshrl.u32 %v109, 7
    %v111 = vsub.s32 1, %v110
    %v112 = vrot.slane %v63, %v111
    %v113 = vlaneseq
    %v114 = vshrl.u32 %v113, 7
    %v115 = vsub.s32 2, %v114
    %v116 = vrot.slane %v63, %v115
    %v117 = vlaneseq
    %v118 = vshrl.u32 %v117, 7
    %v119 = vsub.s32 3, %v118
    %v120 = vrot.slane %v63, %v119
    %v125 = vmul.f32 %v67, %v108
    %v126 = vmul.f32 %v67, %v112
    %v127 = vmul.f32 %v67, %v116
    %v128 = vmul.f32 %v67, %v120
    %v129 = vmul.f32 %v72, %v108
    %v130 = vmul.f32 %v72, %v112
    %v131 = vmul.f32 %v72, %v116
    %v132 = vmul.f32 %v72, %v120
    %v133 = vmul.f32 %v77, %v108
    %v134 = vmul.f32 %v77, %v112
    %v135 = vmul.f32 %v77, %v116
    %v136 = vmul.f32 %v77, %v120
    %v137 = vmul.f32 %v82, %v108
    %v138 = vmul.f32 %v82, %v112
    %v139 = vmul.f32 %v82, %v116
    %v140 = vmul.f32 %v82, %v120
    %v141 = vmul.f32 %v87, %v108
    %v142 = vmul.f32 %v87, %v112
    %v143 = vmul.f32 %v87, %v116
    %v144 = vmul.f32 %v87, %v120
    %v145 = vmul.f32 %v92, %v108
    %v146 = vmul.f32 %v92, %v112
    %v147 = vmul.f32 %v92, %v116
    %v148 = vmul.f32 %v92, %v120
    %v149 = vmul.f32 %v97, %v108
    %v150 = vmul.f32 %v97, %v112
    %v151 = vmul.f32 %v97, %v116
    %v152 = vmul.f32 %v97, %v120
    %v153 = vmul.f32 %v102, %v108
    %v154 = vmul.f32 %v102, %v112
    %v155 = vmul.f32 %v102, %v116
    %v156 = vmul.f32 %v102, %v120
    %158 = vset.pattern.permute.xlu0 0
    %159 = vperm.xlu0 %158, %v37
    %v160 = vpop.permute.xlu0 %159
    %163 = vset.pattern.permute.xlu0 0
    %164 = vperm.xlu0 %163, %v38
    %v165 = vpop.permute.xlu0 %164
    %168 = vset.pattern.permute.xlu0 0
    %169 = vperm.xlu0 %168, %v39
    %v170 = vpop.permute.xlu0 %169
    %173 = vset.pattern.permute.xlu0 0
    %174 = vperm.xlu0 %173, %v40
    %v175 = vpop.permute.xlu0 %174
    %178 = vset.pattern.permute.xlu0 0
    %179 = vperm.xlu0 %178, %v41
    %v180 = vpop.permute.xlu0 %179
    %183 = vset.pattern.permute.xlu0 0
    %184 = vperm.xlu0 %183, %v42
    %v185 = vpop.permute.xlu0 %184
    %188 = vset.pattern.permute.xlu0 0
    %189 = vperm.xlu0 %188, %v43
    %v190 = vpop.permute.xlu0 %189
    %193 = vset.pattern.permute.xlu0 0
    %194 = vperm.xlu0 %193, %v44
    %v195 = vpop.permute.xlu0 %194
    %v197 = vadd.f32 %v125, %v160
    %v198 = vadd.f32 %v126, %v160
    %v199 = vadd.f32 %v127, %v160
    %v200 = vadd.f32 %v128, %v160
    %v201 = vadd.f32 %v129, %v165
    %v202 = vadd.f32 %v130, %v165
    %v203 = vadd.f32 %v131, %v165
    %v204 = vadd.f32 %v132, %v165
    %v205 = vadd.f32 %v133, %v170
    %v206 = vadd.f32 %v134, %v170
    %v207 = vadd.f32 %v135, %v170
    %v208 = vadd.f32 %v136, %v170
    %v209 = vadd.f32 %v137, %v175
    %v210 = vadd.f32 %v138, %v175
    %v211 = vadd.f32 %v139, %v175
    %v212 = vadd.f32 %v140, %v175
    %v213 = vadd.f32 %v141, %v180
    %v214 = vadd.f32 %v142, %v180
    %v215 = vadd.f32 %v143, %v180
    %v216 = vadd.f32 %v144, %v180
    %v217 = vadd.f32 %v145, %v185
    %v218 = vadd.f32 %v146, %v185
    %v219 = vadd.f32 %v147, %v185
    %v220 = vadd.f32 %v148, %v185
    %v221 = vadd.f32 %v149, %v190
    %v222 = vadd.f32 %v150, %v190
    %v223 = vadd.f32 %v151, %v190
    %v224 = vadd.f32 %v152, %v190
    %v225 = vadd.f32 %v153, %v195
    %v226 = vadd.f32 %v154, %v195
    %v227 = vadd.f32 %v155, %v195
    %v228 = vadd.f32 %v156, %v195
    %v229 = vtanh.pop %v197
    %v230 = vtanh.pop %v198
    %v231 = vtanh.pop %v199
    %v232 = vtanh.pop %v200
    %v233 = vtanh.pop %v201
    %v234 = vtanh.pop %v202
    %v235 = vtanh.pop %v203
    %v236 = vtanh.pop %v204
    %v237 = vtanh.pop %v205
    %v238 = vtanh.pop %v206
    %v239 = vtanh.pop %v207
    %v240 = vtanh.pop %v208
    %v241 = vtanh.pop %v209
    %v242 = vtanh.pop %v210
    %v243 = vtanh.pop %v211
    %v244 = vtanh.pop %v212
    %v245 = vtanh.pop %v213
    %v246 = vtanh.pop %v214
    %v247 = vtanh.pop %v215
    %v248 = vtanh.pop %v216
    %v249 = vtanh.pop %v217
    %v250 = vtanh.pop %v218
    %v251 = vtanh.pop %v219
    %v252 = vtanh.pop %v220
    %v253 = vtanh.pop %v221
    %v254 = vtanh.pop %v222
    %v255 = vtanh.pop %v223
    %v256 = vtanh.pop %v224
    %v257 = vtanh.pop %v225
    %v258 = vtanh.pop %v226
    %v259 = vtanh.pop %v227
    %v260 = vtanh.pop %v228
    %262 = vset.pattern.permute.xlu0 0
    %263 = vperm.xlu0 %262, %v53
    %v264 = vpop.permute.xlu0 %263
    %267 = vset.pattern.permute.xlu0 0
    %268 = vperm.xlu0 %267, %v54
    %v269 = vpop.permute.xlu0 %268
    %272 = vset.pattern.permute.xlu0 0
    %273 = vperm.xlu0 %272, %v55
    %v274 = vpop.permute.xlu0 %273
    %277 = vset.pattern.permute.xlu0 0
    %278 = vperm.xlu0 %277, %v56
    %v279 = vpop.permute.xlu0 %278
    %282 = vset.pattern.permute.xlu0 0
    %283 = vperm.xlu0 %282, %v57
    %v284 = vpop.permute.xlu0 %283
    %287 = vset.pattern.permute.xlu0 0
    %288 = vperm.xlu0 %287, %v58
    %v289 = vpop.permute.xlu0 %288
    %292 = vset.pattern.permute.xlu0 0
    %293 = vperm.xlu0 %292, %v59
    %v294 = vpop.permute.xlu0 %293
    %297 = vset.pattern.permute.xlu0 0
    %298 = vperm.xlu0 %297, %v60
    %v299 = vpop.permute.xlu0 %298
    %vm301 = vcmask 523264
    %v303 = vsel %vm301, %v45, 0
    %v306 = vsel %vm301, %v46, 0
    %v309 = vsel %vm301, %v47, 0
    %v312 = vsel %vm301, %v48, 0
    %v315 = vsel %vm301, %v49, 0
    %v318 = vsel %vm301, %v50, 0
    %v321 = vsel %vm301, %v51, 0
    %v324 = vsel %vm301, %v52, 0
    %326 = vmatprep.subr.mxu0 0.0
    %327 = vmatpush1.msra.mxu0 0.0
    %328 = vmatprep.subr.mxu0 0.0
    %329 = vmatpush1.msra.mxu0 0.0
    %330 = vmatprep.subr.mxu0 0.0
    %331 = vmatpush1.msra.mxu0 0.0
    %332 = vmatprep.subr.mxu0 0.0
    %333 = vmatpush1.msra.mxu0 0.0
    %334 = vmatprep.subr.mxu0 0.0
    %335 = vmatpush1.msra.mxu0 0.0
    %336 = vmatprep.subr.mxu0 0.0
    %337 = vmatpush1.msra.mxu0 0.0
    %338 = vmatprep.subr.mxu0 0.0
    %339 = vmatpush1.msra.mxu0 0.0
    %340 = vmatprep.subr.mxu0 0.0
    %341 = vmatpush1.msra.mxu0 0.0
    %342 = vmatprep.subr.mxu0 %v258
    %343 = vmatpush1.msra.mxu0 %v257
    %344 = vmatprep.subr.mxu0 %v254
    %345 = vmatpush1.msra.mxu0 %v253
    %346 = vmatprep.subr.mxu0 %v250
    %347 = vmatpush1.msra.mxu0 %v249
    %348 = vmatprep.subr.mxu0 %v246
    %349 = vmatpush1.msra.mxu0 %v245
    %350 = vmatprep.subr.mxu0 %v242
    %351 = vmatpush1.msra.mxu0 %v241
    %352 = vmatprep.subr.mxu0 %v238
    %353 = vmatpush1.msra.mxu0 %v237
    %354 = vmatprep.subr.mxu0 %v234
    %355 = vmatpush1.msra.mxu0 %v233
    %356 = vmatprep.subr.mxu0 %v230
    %357 = vmatpush1.msra.mxu0 %v229
    %358 = vmatprep.subr.mxu0 0.0
    %359 = vmatpush2.msra.mxu0 0.0
    %360 = vmatprep.subr.mxu0 0.0
    %361 = vmatpush2.msra.mxu0 0.0
    %362 = vmatprep.subr.mxu0 0.0
    %363 = vmatpush2.msra.mxu0 0.0
    %364 = vmatprep.subr.mxu0 0.0
    %365 = vmatpush2.msra.mxu0 0.0
    %366 = vmatprep.subr.mxu0 0.0
    %367 = vmatpush2.msra.mxu0 0.0
    %368 = vmatprep.subr.mxu0 0.0
    %369 = vmatpush2.msra.mxu0 0.0
    %370 = vmatprep.subr.mxu0 0.0
    %371 = vmatpush2.msra.mxu0 0.0
    %372 = vmatprep.subr.mxu0 0.0
    %373 = vmatpush2.msra.mxu0 0.0
    %374 = vmatprep.subr.mxu0 0.0
    %375 = vmatpush2.msra.mxu0 0.0
    %376 = vmatprep.subr.mxu0 0.0
    %377 = vmatpush2.msra.mxu0 0.0
    %378 = vmatprep.subr.mxu0 0.0
    %379 = vmatpush2.msra.mxu0 0.0
    %380 = vmatprep.subr.mxu0 0.0
    %381 = vmatpush2.msra.mxu0 0.0
    %382 = vmatprep.subr.mxu0 0.0
    %383 = vmatpush2.msra.mxu0 0.0
    %384 = vmatprep.subr.mxu0 0.0
    %385 = vmatpush2.msra.mxu0 0.0
    %386 = vmatprep.subr.mxu0 0.0
    %387 = vmatpush2.msra.mxu0 0.0
    %388 = vmatprep.subr.mxu0 0.0
    %389 = vmatpush2.msra.mxu0 0.0
    %390 = vmatprep.mubr.f32.mxu0 0.0
    %391 = vmatmul.mubr.f32.gmra.mxu0 %v303
    %v392 = vpop.f32.mrf.mxu0
    %v393 = vadd.f32 %v264, %v392
    %v394 = vpop.f32.mrf.mxu0
    %v395 = vadd.f32 %v264, %v394
    %396 = vmatprep.mubr.f32.mxu0 0.0
    %397 = vmatmul.mubr.f32.gmra.mxu0 %v306
    %v398 = vpop.f32.mrf.mxu0
    %v399 = vadd.f32 %v269, %v398
    %v400 = vpop.f32.mrf.mxu0
    %v401 = vadd.f32 %v269, %v400
    %402 = vmatprep.mubr.f32.mxu0 0.0
    %403 = vmatmul.mubr.f32.gmra.mxu0 %v309
    %v404 = vpop.f32.mrf.mxu0
    %v405 = vadd.f32 %v274, %v404
    %v406 = vpop.f32.mrf.mxu0
    %v407 = vadd.f32 %v274, %v406
    %408 = vmatprep.mubr.f32.mxu0 0.0
    %409 = vmatmul.mubr.f32.gmra.mxu0 %v312
    %v410 = vpop.f32.mrf.mxu0
    %v411 = vadd.f32 %v279, %v410
    %v412 = vpop.f32.mrf.mxu0
    %v413 = vadd.f32 %v279, %v412
    %414 = vmatprep.mubr.f32.mxu0 0.0
    %415 = vmatmul.mubr.f32.gmra.mxu0 %v315
    %v416 = vpop.f32.mrf.mxu0
    %v417 = vadd.f32 %v284, %v416
    %v418 = vpop.f32.mrf.mxu0
    %v419 = vadd.f32 %v284, %v418
    %420 = vmatprep.mubr.f32.mxu0 0.0
    %421 = vmatmul.mubr.f32.gmra.mxu0 %v318
    %v422 = vpop.f32.mrf.mxu0
    %v423 = vadd.f32 %v289, %v422
    %v424 = vpop.f32.mrf.mxu0
    %v425 = vadd.f32 %v289, %v424
    %426 = vmatprep.mubr.f32.mxu0 0.0
    %427 = vmatmul.mubr.f32.gmra.mxu0 %v321
    %v428 = vpop.f32.mrf.mxu0
    %v429 = vadd.f32 %v294, %v428
    %v430 = vpop.f32.mrf.mxu0
    %v431 = vadd.f32 %v294, %v430
    %432 = vmatprep.mubr.f32.mxu0 0.0
    %433 = vmatmul.mubr.f32.gmra.mxu0 %v324
    %v434 = vpop.f32.mrf.mxu0
    %v435 = vadd.f32 %v299, %v434
    %v436 = vpop.f32.mrf.mxu0
    %v437 = vadd.f32 %v299, %v436
    %438 = vdwg.mxu0
    %439 = vmatprep.subr.mxu0 0.0
    %440 = vmatpush1.msra.mxu0 0.0
    %441 = vmatprep.subr.mxu0 0.0
    %442 = vmatpush1.msra.mxu0 0.0
    %443 = vmatprep.subr.mxu0 0.0
    %444 = vmatpush1.msra.mxu0 0.0
    %445 = vmatprep.subr.mxu0 0.0
    %446 = vmatpush1.msra.mxu0 0.0
    %447 = vmatprep.subr.mxu0 0.0
    %448 = vmatpush1.msra.mxu0 0.0
    %449 = vmatprep.subr.mxu0 0.0
    %450 = vmatpush1.msra.mxu0 0.0
    %451 = vmatprep.subr.mxu0 0.0
    %452 = vmatpush1.msra.mxu0 0.0
    %453 = vmatprep.subr.mxu0 0.0
    %454 = vmatpush1.msra.mxu0 0.0
    %455 = vmatprep.subr.mxu0 %v260
    %456 = vmatpush1.msra.mxu0 %v259
    %457 = vmatprep.subr.mxu0 %v256
    %458 = vmatpush1.msra.mxu0 %v255
    %459 = vmatprep.subr.mxu0 %v252
    %460 = vmatpush1.msra.mxu0 %v251
    %461 = vmatprep.subr.mxu0 %v248
    %462 = vmatpush1.msra.mxu0 %v247
    %463 = vmatprep.subr.mxu0 %v244
    %464 = vmatpush1.msra.mxu0 %v243
    %465 = vmatprep.subr.mxu0 %v240
    %466 = vmatpush1.msra.mxu0 %v239
    %467 = vmatprep.subr.mxu0 %v236
    %468 = vmatpush1.msra.mxu0 %v235
    %469 = vmatprep.subr.mxu0 %v232
    %470 = vmatpush1.msra.mxu0 %v231
    %471 = vmatprep.subr.mxu0 0.0
    %472 = vmatpush2.msra.mxu0 0.0
    %473 = vmatprep.subr.mxu0 0.0
    %474 = vmatpush2.msra.mxu0 0.0
    %475 = vmatprep.subr.mxu0 0.0
    %476 = vmatpush2.msra.mxu0 0.0
    %477 = vmatprep.subr.mxu0 0.0
    %478 = vmatpush2.msra.mxu0 0.0
    %479 = vmatprep.subr.mxu0 0.0
    %480 = vmatpush2.msra.mxu0 0.0
    %481 = vmatprep.subr.mxu0 0.0
    %482 = vmatpush2.msra.mxu0 0.0
    %483 = vmatprep.subr.mxu0 0.0
    %484 = vmatpush2.msra.mxu0 0.0
    %485 = vmatprep.subr.mxu0 0.0
    %486 = vmatpush2.msra.mxu0 0.0
    %487 = vmatprep.subr.mxu0 0.0
    %488 = vmatpush2.msra.mxu0 0.0
    %489 = vmatprep.subr.mxu0 0.0
    %490 = vmatpush2.msra.mxu0 0.0
    %491 = vmatprep.subr.mxu0 0.0
    %492 = vmatpush2.msra.mxu0 0.0
    %493 = vmatprep.subr.mxu0 0.0
    %494 = vmatpush2.msra.mxu0 0.0
    %495 = vmatprep.subr.mxu0 0.0
    %496 = vmatpush2.msra.mxu0 0.0
    %497 = vmatprep.subr.mxu0 0.0
    %498 = vmatpush2.msra.mxu0 0.0
    %499 = vmatprep.subr.mxu0 0.0
    %500 = vmatpush2.msra.mxu0 0.0
    %501 = vmatprep.subr.mxu0 0.0
    %502 = vmatpush2.msra.mxu0 0.0
    %503 = vmatprep.mubr.f32.mxu0 0.0
    %504 = vmatmul.mubr.f32.gmra.mxu0 %v303
    %v505 = vpop.f32.mrf.mxu0
    %v506 = vadd.f32 %v264, %v505
    %v507 = vpop.f32.mrf.mxu0
    %v508 = vadd.f32 %v264, %v507
    %509 = vmatprep.mubr.f32.mxu0 0.0
    %510 = vmatmul.mubr.f32.gmra.mxu0 %v306
    %v511 = vpop.f32.mrf.mxu0
    %v512 = vadd.f32 %v269, %v511
    %v513 = vpop.f32.mrf.mxu0
    %v514 = vadd.f32 %v269, %v513
    %515 = vmatprep.mubr.f32.mxu0 0.0
    %516 = vmatmul.mubr.f32.gmra.mxu0 %v309
    %v517 = vpop.f32.mrf.mxu0
    %v518 = vadd.f32 %v274, %v517
    %v519 = vpop.f32.mrf.mxu0
    %v520 = vadd.f32 %v274, %v519
    %521 = vmatprep.mubr.f32.mxu0 0.0
    %522 = vmatmul.mubr.f32.gmra.mxu0 %v312
    %v523 = vpop.f32.mrf.mxu0
    %v524 = vadd.f32 %v279, %v523
    %v525 = vpop.f32.mrf.mxu0
    %v526 = vadd.f32 %v279, %v525
    %527 = vmatprep.mubr.f32.mxu0 0.0
    %528 = vmatmul.mubr.f32.gmra.mxu0 %v315
    %v529 = vpop.f32.mrf.mxu0
    %v530 = vadd.f32 %v284, %v529
    %v531 = vpop.f32.mrf.mxu0
    %v532 = vadd.f32 %v284, %v531
    %533 = vmatprep.mubr.f32.mxu0 0.0
    %534 = vmatmul.mubr.f32.gmra.mxu0 %v318
    %v535 = vpop.f32.mrf.mxu0
    %v536 = vadd.f32 %v289, %v535
    %v537 = vpop.f32.mrf.mxu0
    %v538 = vadd.f32 %v289, %v537
    %539 = vmatprep.mubr.f32.mxu0 0.0
    %540 = vmatmul.mubr.f32.gmra.mxu0 %v321
    %v541 = vpop.f32.mrf.mxu0
    %v542 = vadd.f32 %v294, %v541
    %v543 = vpop.f32.mrf.mxu0
    %v544 = vadd.f32 %v294, %v543
    %545 = vmatprep.mubr.f32.mxu0 0.0
    %546 = vmatmul.mubr.f32.gmra.mxu0 %v324
    %v547 = vpop.f32.mrf.mxu0
    %v548 = vadd.f32 %v299, %v547
    %v549 = vpop.f32.mrf.mxu0
    %v550 = vadd.f32 %v299, %v549
    %551 = vdwg.mxu0
    %v552 = vtanh.pop %v393
    %v553 = vtanh.pop %v395
    %v554 = vtanh.pop %v506
    %v555 = vtanh.pop %v508
    %v556 = vtanh.pop %v399
    %v557 = vtanh.pop %v401
    %v558 = vtanh.pop %v512
    %v559 = vtanh.pop %v514
    %v560 = vtanh.pop %v405
    %v561 = vtanh.pop %v407
    %v562 = vtanh.pop %v518
    %v563 = vtanh.pop %v520
    %v564 = vtanh.pop %v411
    %v565 = vtanh.pop %v413
    %v566 = vtanh.pop %v524
    %v567 = vtanh.pop %v526
    %v568 = vtanh.pop %v417
    %v569 = vtanh.pop %v419
    %v570 = vtanh.pop %v530
    %v571 = vtanh.pop %v532
    %v572 = vtanh.pop %v423
    %v573 = vtanh.pop %v425
    %v574 = vtanh.pop %v536
    %v575 = vtanh.pop %v538
    %v576 = vtanh.pop %v429
    %v577 = vtanh.pop %v431
    %v578 = vtanh.pop %v542
    %v579 = vtanh.pop %v544
    %v580 = vtanh.pop %v435
    %v581 = vtanh.pop %v437
    %v582 = vtanh.pop %v548
    %v583 = vtanh.pop %v550
    %585 = vset.pattern.permute.xlu0 0
    %586 = vperm.xlu0 %585, %v62
    %v587 = vpop.permute.xlu0 %586
    %v589 = vlaneseq
    %v590 = vshrl.u32 %v589, 7
    %v591 = vsub.s32 0, %v590
    %v592 = vrot.slane %v587, %v591
    %v594 = vsel %vm301, %v61, 0
    %596 = vmatprep.subr.mxu0 0.0
    %597 = vmatpush1.msra.mxu0 0.0
    %598 = vmatprep.subr.mxu0 0.0
    %599 = vmatpush1.msra.mxu0 0.0
    %600 = vmatprep.subr.mxu0 0.0
    %601 = vmatpush1.msra.mxu0 0.0
    %602 = vmatprep.subr.mxu0 0.0
    %603 = vmatpush1.msra.mxu0 0.0
    %604 = vmatprep.subr.mxu0 0.0
    %605 = vmatpush1.msra.mxu0 0.0
    %606 = vmatprep.subr.mxu0 0.0
    %607 = vmatpush1.msra.mxu0 0.0
    %608 = vmatprep.subr.mxu0 0.0
    %609 = vmatpush1.msra.mxu0 0.0
    %610 = vmatprep.subr.mxu0 0.0
    %611 = vmatpush1.msra.mxu0 0.0
    %612 = vmatprep.subr.mxu0 %v581
    %613 = vmatpush1.msra.mxu0 %v580
    %614 = vmatprep.subr.mxu0 %v577
    %615 = vmatpush1.msra.mxu0 %v576
    %616 = vmatprep.subr.mxu0 %v573
    %617 = vmatpush1.msra.mxu0 %v572
    %618 = vmatprep.subr.mxu0 %v569
    %619 = vmatpush1.msra.mxu0 %v568
    %620 = vmatprep.subr.mxu0 %v565
    %621 = vmatpush1.msra.mxu0 %v564
    %622 = vmatprep.subr.mxu0 %v561
    %623 = vmatpush1.msra.mxu0 %v560
    %624 = vmatprep.subr.mxu0 %v557
    %625 = vmatpush1.msra.mxu0 %v556
    %626 = vmatprep.subr.mxu0 %v553
    %627 = vmatpush1.msra.mxu0 %v552
    %628 = vmatprep.subr.mxu0 0.0
    %629 = vmatpush2.msra.mxu0 0.0
    %630 = vmatprep.subr.mxu0 0.0
    %631 = vmatpush2.msra.mxu0 0.0
    %632 = vmatprep.subr.mxu0 0.0
    %633 = vmatpush2.msra.mxu0 0.0
    %634 = vmatprep.subr.mxu0 0.0
    %635 = vmatpush2.msra.mxu0 0.0
    %636 = vmatprep.subr.mxu0 0.0
    %637 = vmatpush2.msra.mxu0 0.0
    %638 = vmatprep.subr.mxu0 0.0
    %639 = vmatpush2.msra.mxu0 0.0
    %640 = vmatprep.subr.mxu0 0.0
    %641 = vmatpush2.msra.mxu0 0.0
    %642 = vmatprep.subr.mxu0 0.0
    %643 = vmatpush2.msra.mxu0 0.0
    %644 = vmatprep.subr.mxu0 0.0
    %645 = vmatpush2.msra.mxu0 0.0
    %646 = vmatprep.subr.mxu0 0.0
    %647 = vmatpush2.msra.mxu0 0.0
    %648 = vmatprep.subr.mxu0 0.0
    %649 = vmatpush2.msra.mxu0 0.0
    %650 = vmatprep.subr.mxu0 0.0
    %651 = vmatpush2.msra.mxu0 0.0
    %652 = vmatprep.subr.mxu0 0.0
    %653 = vmatpush2.msra.mxu0 0.0
    %654 = vmatprep.subr.mxu0 0.0
    %655 = vmatpush2.msra.mxu0 0.0
    %656 = vmatprep.subr.mxu0 0.0
    %657 = vmatpush2.msra.mxu0 0.0
    %658 = vmatprep.subr.mxu0 0.0
    %659 = vmatpush2.msra.mxu0 0.0
    %660 = vmatprep.mubr.f32.mxu0 0.0
    %661 = vmatmul.mubr.f32.gmra.mxu0 %v594
    %v662 = vpop.f32.mrf.mxu0
    %v663 = vadd.f32 %v592, %v662
    %v664 = vpop.f32.mrf.mxu0
    %v665 = vadd.f32 %v592, %v664
    %666 = vdwg.mxu0
    %667 = vmatprep.subr.mxu0 0.0
    %668 = vmatpush1.msra.mxu0 0.0
    %669 = vmatprep.subr.mxu0 0.0
    %670 = vmatpush1.msra.mxu0 0.0
    %671 = vmatprep.subr.mxu0 0.0
    %672 = vmatpush1.msra.mxu0 0.0
    %673 = vmatprep.subr.mxu0 0.0
    %674 = vmatpush1.msra.mxu0 0.0
    %675 = vmatprep.subr.mxu0 0.0
    %676 = vmatpush1.msra.mxu0 0.0
    %677 = vmatprep.subr.mxu0 0.0
    %678 = vmatpush1.msra.mxu0 0.0
    %679 = vmatprep.subr.mxu0 0.0
    %680 = vmatpush1.msra.mxu0 0.0
    %681 = vmatprep.subr.mxu0 0.0
    %682 = vmatpush1.msra.mxu0 0.0
    %683 = vmatprep.subr.mxu0 %v583
    %684 = vmatpush1.msra.mxu0 %v582
    %685 = vmatprep.subr.mxu0 %v579
    %686 = vmatpush1.msra.mxu0 %v578
    %687 = vmatprep.subr.mxu0 %v575
    %688 = vmatpush1.msra.mxu0 %v574
    %689 = vmatprep.subr.mxu0 %v571
    %690 = vmatpush1.msra.mxu0 %v570
    %691 = vmatprep.subr.mxu0 %v567
    %692 = vmatpush1.msra.mxu0 %v566
    %693 = vmatprep.subr.mxu0 %v563
    %694 = vmatpush1.msra.mxu0 %v562
    %695 = vmatprep.subr.mxu0 %v559
    %696 = vmatpush1.msra.mxu0 %v558
    %697 = vmatprep.subr.mxu0 %v555
    %698 = vmatpush1.msra.mxu0 %v554
    %699 = vmatprep.subr.mxu0 0.0
    %700 = vmatpush2.msra.mxu0 0.0
    %701 = vmatprep.subr.mxu0 0.0
    %702 = vmatpush2.msra.mxu0 0.0
    %703 = vmatprep.subr.mxu0 0.0
    %704 = vmatpush2.msra.mxu0 0.0
    %705 = vmatprep.subr.mxu0 0.0
    %706 = vmatpush2.msra.mxu0 0.0
    %707 = vmatprep.subr.mxu0 0.0
    %708 = vmatpush2.msra.mxu0 0.0
    %709 = vmatprep.subr.mxu0 0.0
    %710 = vmatpush2.msra.mxu0 0.0
    %711 = vmatprep.subr.mxu0 0.0
    %712 = vmatpush2.msra.mxu0 0.0
    %713 = vmatprep.subr.mxu0 0.0
    %714 = vmatpush2.msra.mxu0 0.0
    %715 = vmatprep.subr.mxu0 0.0
    %716 = vmatpush2.msra.mxu0 0.0
    %717 = vmatprep.subr.mxu0 0.0
    %718 = vmatpush2.msra.mxu0 0.0
    %719 = vmatprep.subr.mxu0 0.0
    %720 = vmatpush2.msra.mxu0 0.0
    %721 = vmatprep.subr.mxu0 0.0
    %722 = vmatpush2.msra.mxu0 0.0
    %723 = vmatprep.subr.mxu0 0.0
    %724 = vmatpush2.msra.mxu0 0.0
    %725 = vmatprep.subr.mxu0 0.0
    %726 = vmatpush2.msra.mxu0 0.0
    %727 = vmatprep.subr.mxu0 0.0
    %728 = vmatpush2.msra.mxu0 0.0
    %729 = vmatprep.subr.mxu0 0.0
    %730 = vmatpush2.msra.mxu0 0.0
    %731 = vmatprep.mubr.f32.mxu0 0.0
    %732 = vmatmul.mubr.f32.gmra.mxu0 %v594
    %v733 = vpop.f32.mrf.mxu0
    %v734 = vadd.f32 %v592, %v733
    %v735 = vpop.f32.mrf.mxu0
    %v736 = vadd.f32 %v592, %v735
    %737 = vdwg.mxu0
    %v742 = vcombine.low %v663, %v665
    %v743 = vcombine.low %v734, %v736
    %v745 = vunpack.c.l.s4 1966171168
    %v746 = vunpack.c.0.s8 %v745
    %v747 = vlaneseq
    %v748 = vshrl.u32 %v747, 7
    %v749 = vsub.s32 %v746, %v748
    %v750 = vrot.slane %v742, %v749
    %v752 = vunpack.c.l.s4 1966171168
    %v753 = vunpack.c.0.s8 %v752
    %v754 = vlaneseq
    %v755 = vshrl.u32 %v754, 7
    %v756 = vsub.s32 %v753, %v755
    %v757 = vrot.slane %v743, %v756
    %v758 = vcombine.low %v750, %v757
    %v760 = vunpack.c.l.s4 1966171168
    %v761 = vunpack.c.0.s8 %v760
    %v762 = vlaneseq
    %v763 = vshrl.u32 %v762, 7
    %v764 = vsub.s32 %v761, %v763
    %v765 = vrot.slane %v758, %v764
    %v767 = vlaneseq
    %vm768 = vcmp.ge.s32.totalorder %v767, 0
    %vm769 = vcmp.lt.s32.totalorder %v767, 512
    %vm770 = vmand %vm768, %vm769
    %771 = vst.msk [vmem:[#allocation3] sm:$0xf] %vm770, %v765
    // Predicated region
    $region30: #{tpu_custom_call.1} parent=1 // pred_check
      _
    $region31: #{tpu_custom_call.1} parent=1 // pred_check_branch
      %773 = sbr.rel (0) target = $region33
    $region32: #{tpu_custom_call.1} parent=1 // pred_region
      %s775 = ssub.s32 64, 64
      %776 = vsyncadd [#allocation4], %s775
      %s778 = sshll.u32 [#allocation3], 4
      %s779 = int_to_ptr.vmem [resolvable:$true] %s778
      %781 = dma.vmem_to_hbm [thread:$0]  %s779, 64, %s7, [#allocation4]
    $region33: #{tpu_custom_call.1} parent=1 // pred_fallthru
      _
    // Predicated region
    $region34: #{tpu_custom_call.1} parent=1 // pred_check
      _
    $region35: #{tpu_custom_call.1} parent=1 // pred_check_branch
      %783 = sbr.rel (0) target = $region37
    $region36: #{tpu_custom_call.1} parent=1 // pred_region
      %784 = dma.done [#allocation4], 64
    $region37: #{tpu_custom_call.1} parent=1 // pred_fallthru
      _
    %785 = vsyncpa [#allocation4], 1

</llo_original>
